<compile_context>
chip_gen: v7x
topology: tpu7x:2x2x1
jax: 0.10.0
libtpu: 0.0.40
codegen_flags: <defaults>
</compile_context>

<pallas_src>
import jax
import jax.numpy as jnp
from jax.experimental import pallas as pl
from jax.experimental.pallas import tpu as pltpu


def _round_up(n, m):
    return ((n + m - 1) // m) * m


def _embed_kernel(x_ref, w_ref, b_ref, o_ref):
    # x_ref: (1, L, TV) bf16   w_ref: (L, TD) bf16   b_ref: (1, TD) f32   o_ref: (1, TV, TD)
    # Contract over L (dim 0 of both operands): equivalent to x_blk.T @ w, done on the MXU
    # without any HBM-level transpose of the activations.
    y = jax.lax.dot_general(
        x_ref[0],
        w_ref[...],
        dimension_numbers=(((0,), (0,)), ((), ())),
        preferred_element_type=jnp.float32,
    )                                      # (TV, TD), fp32 accumulation
    o_ref[0] = (y + b_ref[...]).astype(o_ref.dtype)


def data_embedding_inverted(x, x_mark, weight, bias, *, tile_v=256, tile_d=256):
    """Forward of DataEmbedding_inverted.

    x:      [B, L, N]
    x_mark: [B, L, M] or None
    weight: [D, L]   (torch nn.Linear(c_in=L, d_model=D) weight layout)
    bias:   [D]
    returns [B, N(+M), D]  (eval-mode dropout == identity)
    """
    B, L, _ = x.shape
    # Concat on the LAST axis -> [B, L, V]; no transpose pass through HBM.
    if x_mark is not None:
        x_cat = jnp.concatenate([x, x_mark], axis=-1)
    else:
        x_cat = x
    V = x_cat.shape[-1]
    D = weight.shape[0]
    out_dtype = x.dtype

    # bf16 operands for the MXU (halves activation DMA traffic); fp32 accumulation in-kernel.
    x_bf = x_cat.astype(jnp.bfloat16)                          # [B, L, V]
    w_t = jnp.transpose(weight, (1, 0)).astype(jnp.bfloat16)   # [L, D] (tiny, one-time)
    b2d = bias.astype(jnp.float32).reshape(1, D)               # [1, D]

    # Lane-dense, MXU-aligned tiles (multiples of 128).  Pallas masks the partial
    # trailing blocks when V or D are not multiples of the tile size.
    tv = min(tile_v, _round_up(V, 128))
    td = min(tile_d, _round_up(D, 128))
    grid = (pl.cdiv(D, td), B, pl.cdiv(V, tv))  # D-tiles outermost: weight block stays resident

    out = pl.pallas_call(
        _embed_kernel,
        out_shape=jax.ShapeDtypeStruct((B, V, D), out_dtype),
        grid_spec=pltpu.PrefetchScalarGridSpec(
            num_scalar_prefetch=0,
            grid=grid,
            in_specs=[
                pl.BlockSpec((1, L, tv), lambda di, b, vi: (b, 0, vi)),   # activations
                pl.BlockSpec((L, td), lambda di, b, vi: (0, di)),         # weight (resident per di)
                pl.BlockSpec((1, td), lambda di, b, vi: (0, di)),         # bias
            ],
            out_specs=pl.BlockSpec((1, tv, td), lambda di, b, vi: (b, vi, di)),
        ),
        compiler_params=pltpu.CompilerParams(
            dimension_semantics=("parallel", "parallel", "parallel"),
            vmem_limit_bytes=32 * 1024 * 1024,
        ),
    )(x_bf, w_t, b2d)
    # Dropout(p=0.1) is identity in eval/inference mode.
    # TODO(synk): training-mode dropout would use pltpu.prng_seed + pltpu.prng_random_bits.
    return out


if __name__ == "__main__":
    key = jax.random.PRNGKey(0)
    B, L, N, M, D = 2, 8, 4, 4, 32   # batch, seq_len (=c_in of Linear), variates, marks, d_model

    k_x, k_m, k_w, k_b = jax.random.split(key, 4)
    x = jax.random.normal(k_x, (B, L, N), dtype=jnp.float32)
    x_mark = jax.random.normal(k_m, (B, L, M), dtype=jnp.float32)

    # Deterministic nn.Linear(c_in=L, d_model=D) init: U(-1/sqrt(L), 1/sqrt(L))
    bound = 1.0 / (L ** 0.5)
    weight = jax.random.uniform(k_w, (D, L), minval=-bound, maxval=bound, dtype=jnp.float32)
    bias = jax.random.uniform(k_b, (D,), minval=-bound, maxval=bound, dtype=jnp.float32)

    out = data_embedding_inverted(x, x_mark, weight, bias)
    out = jax.block_until_ready(out)
    assert out.shape == (B, N + M, D)

    # Reference with the same bf16 operand quantization (fp32 accumulation) — tight check.
    x_cat = jnp.concatenate([x, x_mark], axis=-1)                          # [B, L, V]
    xq = x_cat.astype(jnp.bfloat16).astype(jnp.float32)
    wq = weight.astype(jnp.bfloat16).astype(jnp.float32)
    ref_q = jnp.einsum("blv,dl->bvd", xq, wq) + bias
    assert jnp.allclose(out, ref_q, atol=1e-2, rtol=1e-2), float(jnp.max(jnp.abs(out - ref_q)))

    # Sanity check vs. full-precision PyTorch semantics (loose tolerance due to bf16 inputs).
    ref_f32 = jnp.einsum("blv,dl->bvd", x_cat, weight) + bias
    assert jnp.allclose(out, ref_f32, atol=5e-2, rtol=5e-2)

    # Also exercise the x_mark=None path.
    out_nm = jax.block_until_ready(data_embedding_inverted(x, None, weight, bias))
    ref_nm = jnp.einsum("bln,dl->bnd", x.astype(jnp.bfloat16).astype(jnp.float32), wq) + bias
    assert out_nm.shape == (B, N, D)
    assert jnp.allclose(out_nm, ref_nm, atol=1e-2, rtol=1e-2)

    print("KERNEL_OK")
</pallas_src>

<mosaic_0001>
module attributes {stable_mosaic.version = 11 : i64} {
  func.func @_embed_kernel(%arg0: i32, %arg1: i32, %arg2: i32, %arg3: memref<1x8x128xbf16, #tpu.memory_space<vmem>>, %arg4: memref<8x128xbf16, #tpu.memory_space<vmem>>, %arg5: memref<1x128xf32, #tpu.memory_space<vmem>>, %arg6: memref<1x128x128xf32, #tpu.memory_space<vmem>>) attributes {dimension_semantics = [#tpu.dimension_semantics<parallel>, #tpu.dimension_semantics<parallel>, #tpu.dimension_semantics<parallel>], iteration_bounds = array<i64: 1, 2, 1>, scalar_prefetch = 0 : i64, scratch_operands = 0 : i64, tpu.core_type = #tpu.core_type<tc>, window_params = [{transform_indices = @transform_0, window_bounds = array<i64: 1, 8, 128>}, {transform_indices = @transform_1, window_bounds = array<i64: 8, 128>}, {transform_indices = @transform_2, window_bounds = array<i64: 1, 128>}, {transform_indices = @transform_3, window_bounds = array<i64: 1, 128, 128>}]} {
    %c0 = arith.constant 0 : index
    %c0_0 = arith.constant 0 : index
    %c0_1 = arith.constant 0 : index
    %0 = vector.load %arg3[%c0, %c0_0, %c0_1] : memref<1x8x128xbf16, #tpu.memory_space<vmem>>, vector<1x8x128xbf16>
    %1 = vector.shape_cast %0 : vector<1x8x128xbf16> to vector<8x128xbf16>
    %c0_2 = arith.constant 0 : index
    %c0_3 = arith.constant 0 : index
    %2 = vector.load %arg4[%c0_2, %c0_3] : memref<8x128xbf16, #tpu.memory_space<vmem>>, vector<8x128xbf16>
    %cst = arith.constant dense<0.000000e+00> : vector<128x128xf32>
    %3 = tpu.matmul %1, %2, %cst {dimension_numbers = #tpu.dot_dimension_numbers<[0], [0], [1], [1], [0, 1, 1, 1], [], []>} : vector<8x128xbf16>, vector<8x128xbf16>, vector<128x128xf32> -> vector<128x128xf32>
    %c0_4 = arith.constant 0 : index
    %c0_5 = arith.constant 0 : index
    %4 = vector.load %arg5[%c0_4, %c0_5] : memref<1x128xf32, #tpu.memory_space<vmem>>, vector<1x128xf32>
    %5 = vector.broadcast %4 : vector<1x128xf32> to vector<128x128xf32>
    %6 = arith.addf %3, %5 : vector<128x128xf32>
    %c0_6 = arith.constant 0 : index
    %c0_7 = arith.constant 0 : index
    %c0_8 = arith.constant 0 : index
    %7 = vector.load %arg6[%c0_6, %c0_7, %c0_8] : memref<1x128x128xf32, #tpu.memory_space<vmem>>, vector<1x128x128xf32>
    %8 = vector.shape_cast %7 : vector<1x128x128xf32> to vector<128x128xf32>
    %9 = vector.shape_cast %6 : vector<128x128xf32> to vector<1x128x128xf32>
    tpu.vector_store %arg6[%c0_6, %c0_7, %c0_8], %9 {strides = array<i32>} : memref<1x128x128xf32, #tpu.memory_space<vmem>>, vector<1x128x128xf32>,
    return
  }
  func.func @transform_0(%arg0: i32, %arg1: i32, %arg2: i32) -> (i32, i32, i32) {
    %c0_i32 = arith.constant 0 : i32
    %c0_i32_0 = arith.constant 0 : i32
    return %arg1, %c0_i32, %arg2 : i32, i32, i32
  }
  func.func @transform_1(%arg0: i32, %arg1: i32, %arg2: i32) -> (i32, i32) {
    %c0_i32 = arith.constant 0 : i32
    %c0_i32_0 = arith.constant 0 : i32
    return %c0_i32, %arg0 : i32, i32
  }
  func.func @transform_2(%arg0: i32, %arg1: i32, %arg2: i32) -> (i32, i32) {
    %c0_i32 = arith.constant 0 : i32
    %c0_i32_0 = arith.constant 0 : i32
    return %c0_i32, %arg0 : i32, i32
  }
  func.func @transform_3(%arg0: i32, %arg1: i32, %arg2: i32) -> (i32, i32, i32) {
    %c0_i32 = arith.constant 0 : i32
    return %arg1, %arg2, %arg0 : i32, i32, i32
  }
}

</mosaic_0001>

<llo_original>
// kernel: tpu_custom_call.1
$region0: #{tpu_custom_call.1}
  #allocation0 [shape = 'u32[]', space=smem, size = 0x4, offset = 0x4, fixed_abs, tag = 'smem constant byte address 0x4 - core index']
  #allocation1 [shape = 'u32[144,128]{1,0:T(1,128)}', space=vmem, size = 0x12000, scoped, tag = 'internal scratch']
  %s0 = inlined_call_operand.hbm [shape: bf16[2,8,8], index: 0, kind: input, shape index: {}]
  %s1 = inlined_call_operand.hbm [shape: bf16[8,32], index: 1, kind: input, shape index: {}]
  %s2 = inlined_call_operand.vmem [shape: f32[1,32], index: 2, kind: input, shape index: {}]
  %s3 = inlined_call_operand.hbm [shape: f32[2,8,32], index: 3, kind: output, shape index: {}]
  %s4 = sld [smem:[#allocation0]]
  $region53: #{tpu_custom_call.1} parent=0
    _
  %s6 = ssub.s32 1, %s4
  %s7 = scalar_select 0, %s6, %s4
  $region1: #{tpu_custom_call.1} parent=0
    #allocation2 [shape = 'u8[4096]{0}', space=vmem, size = 0x1000, scoped, tag = 'input window, operand 0']
    #allocation3 [shape = 's32[2]{0}', space=sflag, size = 0x8, scoped, tag = 'scoped memory for tpu_custom_call.1']
    #allocation4 [shape = 's32[2]{0}', space=sflag, size = 0x8, scoped, tag = 'scoped memory for tpu_custom_call.1']
    #allocation5 [shape = 'u8[2048]{0}', space=vmem, size = 0x800, scoped, tag = 'input window, operand 1, single buffered']
    #allocation6 [shape = 's32[1]{0}', space=sflag, size = 0x4, scoped, tag = 'scoped memory for tpu_custom_call.1']
    #allocation7 [shape = 'u8[131072]{0}', space=vmem, size = 0x20000, scoped, tag = 'output window, operand 0']
    %8 = vsyncpa [#allocation3], 0
    %s9 = scalar_lea.sflag [#allocation3], 1
    %10 = vsyncpa %s9, 0
    %11 = vsyncpa [#allocation6], 0
    %12 = vsyncpa [#allocation4], 0
    %s13 = scalar_lea.sflag [#allocation4], 1
    %14 = vsyncpa %s13, 0
    loop: start=0, step=1, limit=4
    $region2: #{tpu_custom_call.1} parent=1 // loop_pre_header
      _
    $region3: #{tpu_custom_call.1} parent=1 // loop_header
      %s16 = sphi 0, %s20
      %p17 = scmp.ge.s32.totalorder %s16, 4
      %s23 = sphi 0, %s42
      %s24 = sphi 0, %s38
      %s25 = sphi 0, %s34
      %s26 = sphi 0, %s23
      %s27 = sphi 0, %s24
      %s28 = sphi 0, %s25
      %s29 = sphi 0, %s26
      %s30 = sphi 0, %s27
      %s31 = sphi 0, %s28
      %s47 = sphi 0, %s49
      %s50 = sphi 0, %s47
      %s51 = sphi 0, %s50
      %s67 = sphi 0, %s51
      %s73 = sphi 0, %s75
      %s76 = sphi 0, %s73
      %s77 = sphi 0, %s76
      %s93 = sphi 0, %s77
      %s99 = sphi 0, %s101
      %s102 = sphi 0, %s99
      %s103 = sphi 0, %s102
      %s119 = sphi 0, %s103
      %s129 = sphi 0, %s131
      %s132 = sphi 0, %s129
      %s133 = sphi 0, %s132
      %s149 = sphi 0, %s133
    $region4: #{tpu_custom_call.1} parent=1 // loop_header_branch
      %19 = sbr.rel (%p17) target = $region8
    $region5: #{tpu_custom_call.1} parent=1 // loop_body
      %s21 = ssub.s32 %s16, 1
      %s22 = ssub.s32 %s16, 2
      %s32 = sadd.s32 1, %s25
      %p33 = scmp.ge.s32.totalorder %s32, 1
      %s34 = scalar_select %p33, 0, %s32
      %s35 = sadd.s32 1, %s24
      %s36 = scalar_select %p33, %s35, %s24
      %p37 = scmp.ge.s32.totalorder %s36, 2
      %s38 = scalar_select %p37, 0, %s36
      %s39 = sadd.s32 1, %s23
      %s40 = scalar_select %p37, %s39, %s23
      %p41 = scmp.ge.s32.totalorder %s40, 1
      %s42 = scalar_select %p41, 0, %s40
      %s43 = ssub.s32 %s24, %s38
      %s44 = ssub.s32 %s25, %s34
      %s45 = sor.u32 %s43, %s44
      %p46 = scmp.eq.s32.totalorder %s45, 0
      %s48 = sadd.s32 %s47, 1
      %s49 = scalar_select %p46, %s47, %s48
      %p52 = pneg %p46
      %p53 = scmp.eq.s32.totalorder %s16, 1
      %p54 = por %p52, %p53
      %p55 = scmp.ne.s32.totalorder %s47, %s50
      %p56 = scmp.eq.s32.totalorder %s16, 0
      %p57 = por %p55, %p56
      %p58 = scmp.ne.s32.totalorder %s47, %s50
      %p59 = scmp.eq.s32.totalorder %s21, 1
      %p60 = por %p58, %p59
      %p61 = scmp.ne.s32.totalorder %s50, %s51
      %p62 = scmp.eq.s32.totalorder %s21, 0
      %p63 = por %p61, %p62
      %p64 = scmp.ne.s32.totalorder %s50, %s51
      %p65 = scmp.eq.s32.totalorder %s22, 1
      %p66 = por %p64, %p65
      %p68 = scmp.ne.s32.totalorder %s51, %s67
      %p69 = scmp.eq.s32.totalorder %s22, 0
      %p70 = por %p68, %p69
      %s71 = ssub.s32 %s23, %s42
      %p72 = scmp.eq.s32.totalorder %s71, 0
      %s74 = sadd.s32 %s73, 1
      %s75 = scalar_select %p72, %s73, %s74
      %p78 = pneg %p72
      %p79 = scmp.eq.s32.totalorder %s16, 1
      %p80 = por %p78, %p79
      %p81 = scmp.ne.s32.totalorder %s73, %s76
      %p82 = scmp.eq.s32.totalorder %s16, 0
      %p83 = por %p81, %p82
      %p84 = scmp.ne.s32.totalorder %s73, %s76
      %p85 = scmp.eq.s32.totalorder %s21, 1
      %p86 = por %p84, %p85
      %p87 = scmp.ne.s32.totalorder %s76, %s77
      %p88 = scmp.eq.s32.totalorder %s21, 0
      %p89 = por %p87, %p88
      %p90 = scmp.ne.s32.totalorder %s76, %s77
      %p91 = scmp.eq.s32.totalorder %s22, 1
      %p92 = por %p90, %p91
      %p94 = scmp.ne.s32.totalorder %s77, %s93
      %p95 = scmp.eq.s32.totalorder %s22, 0
      %p96 = por %p94, %p95
      %s97 = ssub.s32 %s23, %s42
      %p98 = scmp.eq.s32.totalorder %s97, 0
      %s100 = sadd.s32 %s99, 1
      %s101 = scalar_select %p98, %s99, %s100
      %p104 = pneg %p98
      %p105 = scmp.eq.s32.totalorder %s16, 1
      %p106 = por %p104, %p105
      %p107 = scmp.ne.s32.totalorder %s99, %s102
      %p108 = scmp.eq.s32.totalorder %s16, 0
      %p109 = por %p107, %p108
      %p110 = scmp.ne.s32.totalorder %s99, %s102
      %p111 = scmp.eq.s32.totalorder %s21, 1
      %p112 = por %p110, %p111
      %p113 = scmp.ne.s32.totalorder %s102, %s103
      %p114 = scmp.eq.s32.totalorder %s21, 0
      %p115 = por %p113, %p114
      %p116 = scmp.ne.s32.totalorder %s102, %s103
      %p117 = scmp.eq.s32.totalorder %s22, 1
      %p118 = por %p116, %p117
      %p120 = scmp.ne.s32.totalorder %s103, %s119
      %p121 = scmp.eq.s32.totalorder %s22, 0
      %p122 = por %p120, %p121
      %s123 = ssub.s32 %s24, %s38
      %s124 = ssub.s32 %s25, %s34
      %s125 = sor.u32 %s123, %s124
      %s126 = ssub.s32 %s23, %s42
      %s127 = sor.u32 %s125, %s126
      %p128 = scmp.eq.s32.totalorder %s127, 0
      %s130 = sadd.s32 %s129, 1
      %s131 = scalar_select %p128, %s129, %s130
      %p134 = pneg %p128
      %p135 = scmp.eq.s32.totalorder %s16, 1
      %p136 = por %p134, %p135
      %p137 = scmp.ne.s32.totalorder %s129, %s132
      %p138 = scmp.eq.s32.totalorder %s16, 0
      %p139 = por %p137, %p138
      %p140 = scmp.ne.s32.totalorder %s129, %s132
      %p141 = scmp.eq.s32.totalorder %s21, 1
      %p142 = por %p140, %p141
      %p143 = scmp.ne.s32.totalorder %s132, %s133
      %p144 = scmp.eq.s32.totalorder %s21, 0
      %p145 = por %p143, %p144
      %p146 = scmp.ne.s32.totalorder %s132, %s133
      %p147 = scmp.eq.s32.totalorder %s22, 1
      %p148 = por %p146, %p147
      %p150 = scmp.ne.s32.totalorder %s133, %s149
      %p151 = scmp.eq.s32.totalorder %s22, 0
      %p152 = por %p150, %p151
      %p153 = scmp.le.s32.totalorder 1, %s16
      %p154 = scmp.lt.s32.totalorder %s16, 3
      %p155 = pnand %p153, %p154
      %p156 = pneg %p155
      // Predicated region
      $region9: #{tpu_custom_call.1} parent=5 // pred_check
        _
      $region10: #{tpu_custom_call.1} parent=5 // pred_check_branch
        %158 = sbr.rel (%p155) target = $region12
      $region11: #{tpu_custom_call.1} parent=5 // pred_region
        %s159 = ssub.s32 %s16, 1
        // Predicated region
        $region13: #{tpu_custom_call.1} parent=11 // pred_check
          %p160 = pneg %p89
        $region14: #{tpu_custom_call.1} parent=11 // pred_check_branch
          %162 = sbr.rel (%p160) target = $region16
        $region15: #{tpu_custom_call.1} parent=11 // pred_region
          %s164 = ssub.s32 64, 64
          %165 = vsyncadd [#allocation6], %s164
          %s166 = smul.addr %s26, 64
          %s167 = scalar_lea.hbm %s1, %s166
          %s169 = sshll.u32 [#allocation5], 4
          %s170 = int_to_ptr.vmem [resolvable:$true] %s169
          %172 = dma.hbm_to_vmem [thread:$0]  %s167, 64, %s170, [#allocation6]
        $region16: #{tpu_custom_call.1} parent=11 // pred_fallthru
          _
        // Predicated region
        $region17: #{tpu_custom_call.1} parent=11 // pred_check
          %p173 = pneg %p115
        $region18: #{tpu_custom_call.1} parent=11 // pred_check_branch
          %175 = sbr.rel (%p173) target = $region20
        $region19: #{tpu_custom_call.1} parent=11 // pred_region
          %p176 = scmp.lt.s32.totalorder %s26, 0
          %s177 = scalar_select %p176, %s26, 0
          %s178 = scalar_lea.vmem %s2, %s177
        $region20: #{tpu_custom_call.1} parent=11 // pred_fallthru
          _
      $region12: #{tpu_custom_call.1} parent=5 // pred_fallthru
        _
      %p179 = scmp.lt.s32.totalorder %s16, 2
      // Predicated region
      $region21: #{tpu_custom_call.1} parent=5 // pred_check
        %p180 = pneg %p179
      $region22: #{tpu_custom_call.1} parent=5 // pred_check_branch
        %182 = sbr.rel (%p180) target = $region24
      $region23: #{tpu_custom_call.1} parent=5 // pred_region
        // Predicated region
        $region25: #{tpu_custom_call.1} parent=23 // pred_check
          %p183 = pneg %p57
        $region26: #{tpu_custom_call.1} parent=23 // pred_check_branch
          %185 = sbr.rel (%p183) target = $region28
        $region27: #{tpu_custom_call.1} parent=23 // pred_region
          %s186 = sand.u32 %s47, 1
          %s187 = scalar_lea.sflag [#allocation3], %s186
          %s188 = sand.u32 %s47, 1
          %s189 = smul.addr %s188, 4
          %s190 = scalar_lea.vmem [#allocation2], %s189
          %s192 = ssub.s32 64, 64
          %193 = vsyncadd %s187, %s192
          %s194 = sadd.s32 %s25, %s24
          %s195 = smul.addr %s194, 64
          %s196 = scalar_lea.hbm %s0, %s195
          %s198 = sshll.u32 %s190, 4
          %s199 = int_to_ptr.vmem [resolvable:$true] %s198
          %201 = dma.hbm_to_vmem [thread:$0]  %s196, 64, %s199, %s187
        $region28: #{tpu_custom_call.1} parent=23 // pred_fallthru
          _
      $region24: #{tpu_custom_call.1} parent=5 // pred_fallthru
        _
      %p202 = scmp.le.s32.totalorder 1, %s16
      %p203 = scmp.lt.s32.totalorder %s16, 3
      %p204 = pnand %p202, %p203
      %p205 = pneg %p204
      // Predicated region
      $region29: #{tpu_custom_call.1} parent=5 // pred_check
        _
      $region30: #{tpu_custom_call.1} parent=5 // pred_check_branch
        %207 = sbr.rel (%p204) target = $region32
      $region31: #{tpu_custom_call.1} parent=5 // pred_region
        %s208 = ssub.s32 %s16, 1
        %s209 = sand.u32 %s50, 1
        %s210 = scalar_lea.sflag [#allocation3], %s209
        %s211 = sand.u32 %s50, 1
        %s212 = smul.addr %s211, 4
        %s213 = scalar_lea.vmem [#allocation2], %s212
        // Predicated region
        $region33: #{tpu_custom_call.1} parent=31 // pred_check
          %p214 = pneg %p63
        $region34: #{tpu_custom_call.1} parent=31 // pred_check_branch
          %216 = sbr.rel (%p214) target = $region36
        $region35: #{tpu_custom_call.1} parent=31 // pred_region
          %217 = dma.done %s210, 64
        $region36: #{tpu_custom_call.1} parent=31 // pred_fallthru
          _
        // Predicated region
        $region37: #{tpu_custom_call.1} parent=31 // pred_check
          %p218 = pneg %p89
        $region38: #{tpu_custom_call.1} parent=31 // pred_check_branch
          %220 = sbr.rel (%p218) target = $region40
        $region39: #{tpu_custom_call.1} parent=31 // pred_region
          %221 = dma.done [#allocation6], 64
        $region40: #{tpu_custom_call.1} parent=31 // pred_fallthru
          _
        %s222 = sand.u32 %s50, 1
        %s223 = scalar_lea.sflag [#allocation3], %s222
        %s224 = sand.u32 %s50, 1
        %s225 = smul.addr %s224, 4
        %s226 = scalar_lea.vmem [#allocation2], %s225
        %p227 = pneg %p63
        %p228 = pneg %p60
        %p229 = pneg %p89
        %p230 = pneg %p86
        %p231 = scmp.lt.s32.totalorder %s26, 0
        %s232 = scalar_select %p231, %s26, 0
        %s233 = scalar_lea.vmem %s2, %s232
        %p234 = pneg %p115
        %p235 = pneg %p112
        %p236 = pneg %p145
        %p237 = pneg %p142
        %s238 = sand.u32 %s132, 1
        %s239 = scalar_lea.sflag [#allocation4], %s238
        %s240 = sand.u32 %s132, 1
        %s241 = smul.addr %s240, 128
        %s242 = scalar_lea.vmem [#allocation7], %s241
        %p243 = scmp.lt.s32.totalorder %s26, 0
        %s244 = scalar_select %p243, %s26, 0
        %s245 = scalar_lea.vmem %s2, %s244
        %s246 = smul.u32 16, %s28
        %s247 = ssub.s32 1, %s246
        %s248 = smul.u32 128, %s247
        %v250 = vld [vmem:[%s213] sm:$0xf]
        %v251 = vld [vmem:[#allocation5] sm:$0xf]
        %v252 = vld [vmem:[%s245] sm:$0x1]
        %v254 = vlaneseq
        %v255 = vshrl.u32 %v254, 7
        %v256 = vsub.s32 0, %v255
        %v257 = vrot.slane %v252, %v256
        %259 = vxpose.xlu0.c.b16.start [1/8] %v250, 128
        %260 = vxpose.xlu0.c.b16.cont [2/8] 0, 128
        %261 = vxpose.xlu0.c.b16.cont [3/8] 0, 128
        %262 = vxpose.xlu0.c.b16.cont [4/8] 0, 128
        %263 = vxpose.xlu0.c.b16.cont [5/8] 0, 128
        %264 = vxpose.xlu0.c.b16.cont [6/8] 0, 128
        %265 = vxpose.xlu0.c.b16.cont [7/8] 0, 128
        %266 = vxpose.xlu0.c.b16.end [8/8] 0, 128
        %v267 = vpop.trf.xlu0
        %v268 = vpop.trf.xlu0
        %v269 = vpop.trf.xlu0
        %v270 = vpop.trf.xlu0
        %v271 = vpop.trf.xlu0
        %v272 = vpop.trf.xlu0
        %v273 = vpop.trf.xlu0
        %v274 = vpop.trf.xlu0
        %vm275 = vcmask 64512
        %v277 = vsel %vm275, %v267, 0
        %v280 = vsel %vm275, %v268, 0
        %v283 = vsel %vm275, %v269, 0
        %v286 = vsel %vm275, %v270, 0
        %v289 = vsel %vm275, %v271, 0
        %v292 = vsel %vm275, %v272, 0
        %v295 = vsel %vm275, %v273, 0
        %v298 = vsel %vm275, %v274, 0
        %vm300 = vcmask 1043456
        %v302 = vsel %vm300, %v251, 0
        %304 = vmatprep.subr.bf16.mxu0 0
        %305 = vmatpush1.bf16.msra.mxu0 %v302
        %306 = vmatprep.subr.bf16.mxu0 0
        %307 = vmatpush1.bf16.msra.mxu0 0
        %308 = vmatprep.subr.bf16.mxu0 0
        %309 = vmatpush1.bf16.msra.mxu0 0
        %310 = vmatprep.subr.bf16.mxu0 0
        %311 = vmatpush1.bf16.msra.mxu0 0
        %312 = vmatprep.subr.bf16.mxu0 0
        %313 = vmatpush1.bf16.msra.mxu0 0
        %314 = vmatprep.subr.bf16.mxu0 0
        %315 = vmatpush1.bf16.msra.mxu0 0
        %316 = vmatprep.subr.bf16.mxu0 0
        %317 = vmatpush1.bf16.msra.mxu0 0
        %318 = vmatprep.subr.bf16.mxu0 0
        %319 = vmatpush1.bf16.msra.mxu0 0
        %320 = vmatprep.subr.bf16.mxu0 0
        %321 = vmatpush1.bf16.msra.mxu0 0
        %322 = vmatprep.subr.bf16.mxu0 0
        %323 = vmatpush1.bf16.msra.mxu0 0
        %324 = vmatprep.subr.bf16.mxu0 0
        %325 = vmatpush1.bf16.msra.mxu0 0
        %326 = vmatprep.subr.bf16.mxu0 0
        %327 = vmatpush1.bf16.msra.mxu0 0
        %328 = vmatprep.subr.bf16.mxu0 0
        %329 = vmatpush1.bf16.msra.mxu0 0
        %330 = vmatprep.subr.bf16.mxu0 0
        %331 = vmatpush1.bf16.msra.mxu0 0
        %332 = vmatprep.subr.bf16.mxu0 0
        %333 = vmatpush1.bf16.msra.mxu0 0
        %334 = vmatprep.subr.bf16.mxu0 0
        %335 = vmatpush1.bf16.msra.mxu0 0
        %336 = vmatprep.mubr.bf16.mxu0 0
        %337 = vmatmul.mubr.bf16.gmra.mrb[0].mxu0 %v277
        %v338 = vpop.f32.mrb[0].mxu0
        %v339 = vadd.f32 %v257, %v338
        %v340 = vpop.f32.mrb[0].mxu0
        %v341 = vpop.f32.mrb[0].mxu0
        %v342 = vadd.f32 %v257, %v341
        %v343 = vpop.f32.mrb[0].mxu0
        %344 = vmatprep.mubr.bf16.mxu0 0
        %345 = vmatmul.mubr.bf16.gmra.mrb[0].mxu0 %v280
        %v346 = vpop.f32.mrb[0].mxu0
        %v347 = vadd.f32 %v257, %v346
        %v348 = vpop.f32.mrb[0].mxu0
        %v349 = vpop.f32.mrb[0].mxu0
        %v350 = vadd.f32 %v257, %v349
        %v351 = vpop.f32.mrb[0].mxu0
        %352 = vmatprep.mubr.bf16.mxu0 0
        %353 = vmatmul.mubr.bf16.gmra.mrb[0].mxu0 %v283
        %v354 = vpop.f32.mrb[0].mxu0
        %v355 = vadd.f32 %v257, %v354
        %v356 = vpop.f32.mrb[0].mxu0
        %v357 = vpop.f32.mrb[0].mxu0
        %v358 = vadd.f32 %v257, %v357
        %v359 = vpop.f32.mrb[0].mxu0
        %360 = vmatprep.mubr.bf16.mxu0 0
        %361 = vmatmul.mubr.bf16.gmra.mrb[0].mxu0 %v286
        %v362 = vpop.f32.mrb[0].mxu0
        %v363 = vadd.f32 %v257, %v362
        %v364 = vpop.f32.mrb[0].mxu0
        %v365 = vpop.f32.mrb[0].mxu0
        %v366 = vadd.f32 %v257, %v365
        %v367 = vpop.f32.mrb[0].mxu0
        %368 = vmatprep.mubr.bf16.mxu0 0
        %369 = vmatmul.mubr.bf16.gmra.mrb[0].mxu0 %v289
        %v370 = vpop.f32.mrb[0].mxu0
        %v371 = vadd.f32 %v257, %v370
        %v372 = vpop.f32.mrb[0].mxu0
        %v373 = vpop.f32.mrb[0].mxu0
        %v374 = vadd.f32 %v257, %v373
        %v375 = vpop.f32.mrb[0].mxu0
        %376 = vmatprep.mubr.bf16.mxu0 0
        %377 = vmatmul.mubr.bf16.gmra.mrb[0].mxu0 %v292
        %v378 = vpop.f32.mrb[0].mxu0
        %v379 = vadd.f32 %v257, %v378
        %v380 = vpop.f32.mrb[0].mxu0
        %v381 = vpop.f32.mrb[0].mxu0
        %v382 = vadd.f32 %v257, %v381
        %v383 = vpop.f32.mrb[0].mxu0
        %384 = vmatprep.mubr.bf16.mxu0 0
        %385 = vmatmul.mubr.bf16.gmra.mrb[0].mxu0 %v295
        %v386 = vpop.f32.mrb[0].mxu0
        %v387 = vadd.f32 %v257, %v386
        %v388 = vpop.f32.mrb[0].mxu0
        %v389 = vpop.f32.mrb[0].mxu0
        %v390 = vadd.f32 %v257, %v389
        %v391 = vpop.f32.mrb[0].mxu0
        %392 = vmatprep.mubr.bf16.mxu0 0
        %393 = vmatmul.mubr.bf16.gmra.mrb[0].mxu0 %v298
        %v394 = vpop.f32.mrb[0].mxu0
        %v395 = vadd.f32 %v257, %v394
        %v396 = vpop.f32.mrb[0].mxu0
        %v397 = vpop.f32.mrb[0].mxu0
        %v398 = vadd.f32 %v257, %v397
        %v399 = vpop.f32.mrb[0].mxu0
        %400 = vdwg.mxu0
        %401 = vst [vmem:[%s242] sm:$0xff] %v339
        %402 = vst [vmem:[%s242 + $0x8] sm:$0xff] %v342
        %403 = vst [vmem:[%s242 + $0x10] sm:$0xff] %v347
        %404 = vst [vmem:[%s242 + $0x18] sm:$0xff] %v350
        %405 = vst [vmem:[%s242 + $0x20] sm:$0xff] %v355
        %406 = vst [vmem:[%s242 + $0x28] sm:$0xff] %v358
        %407 = vst [vmem:[%s242 + $0x30] sm:$0xff] %v363
        %408 = vst [vmem:[%s242 + $0x38] sm:$0xff] %v366
        %409 = vst [vmem:[%s242 + $0x40] sm:$0xff] %v371
        %410 = vst [vmem:[%s242 + $0x48] sm:$0xff] %v374
        %411 = vst [vmem:[%s242 + $0x50] sm:$0xff] %v379
        %412 = vst [vmem:[%s242 + $0x58] sm:$0xff] %v382
        %413 = vst [vmem:[%s242 + $0x60] sm:$0xff] %v387
        %414 = vst [vmem:[%s242 + $0x68] sm:$0xff] %v390
        %415 = vst [vmem:[%s242 + $0x70] sm:$0xff] %v395
        %416 = vst [vmem:[%s242 + $0x78] sm:$0xff] %v398
        %s417 = sand.u32 %s132, 1
        %s418 = scalar_lea.sflag [#allocation4], %s417
        %s419 = sand.u32 %s132, 1
        %s420 = smul.addr %s419, 128
        %s421 = scalar_lea.vmem [#allocation7], %s420
        // Predicated region
        $region41: #{tpu_custom_call.1} parent=31 // pred_check
          %p422 = pneg %p142
        $region42: #{tpu_custom_call.1} parent=31 // pred_check_branch
          %424 = sbr.rel (%p422) target = $region44
        $region43: #{tpu_custom_call.1} parent=31 // pred_region
          %s425 = smul.u32 16, %s28
          %s426 = ssub.s32 1, %s425
          %s427 = smul.u32 128, %s426
          %s429 = ssub.s32 2048, %s427
          %430 = vsyncadd %s418, %s429
          %p431 = scmp.ne.s32.totalorder 0, %s427
          %s432 = sadd.s32 %s26, %s425
          %s433 = sadd.s32 %s432, %s27
          %s434 = smul.addr %s433, 128
          %s435 = scalar_lea.hbm %s3, %s434
          %s436 = smul.u32 8, %s426
          %s437 = sshll.u32 %s421, 4
          %s438 = int_to_ptr.vmem [resolvable:$true] %s437
          %s439 = sshll.u32 %s436, 4
          %443 = dma.vmem_to_hbm [thread:$0]  (%p431), %s438, %s439, %s435, %s418, 128, 128, 8
        $region44: #{tpu_custom_call.1} parent=31 // pred_fallthru
          _
      $region32: #{tpu_custom_call.1} parent=5 // pred_fallthru
        _
      %p444 = scmp.le.s32.totalorder 2, %s16
      // Predicated region
      $region45: #{tpu_custom_call.1} parent=5 // pred_check
        %p445 = pneg %p444
      $region46: #{tpu_custom_call.1} parent=5 // pred_check_branch
        %447 = sbr.rel (%p445) target = $region48
      $region47: #{tpu_custom_call.1} parent=5 // pred_region
        %s448 = ssub.s32 %s16, 2
        // Predicated region
        $region49: #{tpu_custom_call.1} parent=47 // pred_check
          %p449 = pneg %p148
        $region50: #{tpu_custom_call.1} parent=47 // pred_check_branch
          %451 = sbr.rel (%p449) target = $region52
        $region51: #{tpu_custom_call.1} parent=47 // pred_region
          %s452 = sand.u32 %s133, 1
          %s453 = scalar_lea.sflag [#allocation4], %s452
          %s454 = sand.u32 %s133, 1
          %s455 = smul.addr %s454, 128
          %s456 = scalar_lea.vmem [#allocation7], %s455
          %457 = dma.done %s453, 2048
        $region52: #{tpu_custom_call.1} parent=47 // pred_fallthru
          _
      $region48: #{tpu_custom_call.1} parent=5 // pred_fallthru
        _
    $region6: #{tpu_custom_call.1} parent=1 // loop_footer
      %s20 = sadd.s32 1, %s16
    $region7: #{tpu_custom_call.1} parent=1 // loop_footer_branch
      %15 = sbr.rel target = $region3
    $region8: #{tpu_custom_call.1} parent=1 // loop_exit
      _
    %458 = vsyncpa [#allocation3], 1
    %s459 = scalar_lea.sflag [#allocation3], 1
    %460 = vsyncpa %s459, 1
    %461 = vsyncpa [#allocation6], 1
    %462 = vsyncpa [#allocation4], 1
    %s463 = scalar_lea.sflag [#allocation4], 1
    %464 = vsyncpa %s463, 1

</llo_original>
